<compile_context>
chip_gen: v5e
topology: v5e:2x2
jax: 0.10.0
libtpu: 0.0.40
codegen_flags: <defaults>
</compile_context>

<pallas_src>
import functools

import jax
import jax.numpy as jnp
from jax import lax
from jax.experimental import pallas as pl
from jax.experimental.pallas import tpu as pltpu


# ------------------------------- fused kernel -------------------------------

def _cycle_loss_kernel(a_ref, bp_ref, scale_ref,
                       aa_ref, xs_ref, bb_ref, xt_ref,
                       out_ref, acc_ref,
                       *, tile_rows, rows_total, tiles_total, tiles_per_core,
                       thr, eps, l1_scale):
    """Grid = (cores 'parallel', L1 row-tiles 'arbitrary').

    Every step accumulates the L1 |diff| sums of one lane-dense (TR,128) tile.
    The last step per core additionally runs the pooled-similarity matmul and
    both masked, label-smoothed CE directions, then writes this core's partial
    loss into lane (0, 0) of its private (8,128) output block.
    """
    p = pl.program_id(0)                   # core shard (parallel)
    t = pl.program_id(1)                   # L1 tile within this core (arbitrary)

    @pl.when(t == 0)
    def _init():
        acc_ref[...] = jnp.zeros_like(acc_ref)

    # ---------------- L1 reconstruction partial sums (mem-bound) -------------
    g = p * tiles_per_core + t             # global tile index
    rid = g * tile_rows + lax.broadcasted_iota(jnp.int32, (tile_rows, 128), 0)
    valid = (rid < rows_total) & (g < tiles_total)   # ragged last tile / shard
    d = (jnp.abs(aa_ref[...].astype(jnp.float32) - xs_ref[...].astype(jnp.float32)) +
         jnp.abs(bb_ref[...].astype(jnp.float32) - xt_ref[...].astype(jnp.float32)))
    acc_ref[...] += jnp.sum(jnp.where(valid, d, 0.0), axis=0, keepdims=True)

    # --------- finalize: similarity + both filtered InfoNCE directions -------
    @pl.when(t == tiles_per_core - 1)
    def _finalize():
        scale = jnp.exp(scale_ref[0])                       # logit_scale['t'].exp()
        # sim_mat_mean[m, g] = <enc_a[m], pooled_enc_b[g]>  (single MXU matmul)
        sim = lax.dot_general(
            a_ref[...], bp_ref[...],
            dimension_numbers=(((1,), (1,)), ((), ())),
            preferred_element_type=jnp.float32)             # (M, Ng) f32
        m, ng = sim.shape

        # Row direction: label = per-row argmax, keep rows with row_max > thr.
        # CE(label_smoothing=eps) = LSE - (1-eps)*z_max - (eps/C)*sum_j z_j
        rmax = jnp.max(sim, axis=1, keepdims=True)          # (M, 1)  == score
        rmask = (rmax > thr).astype(jnp.float32)
        rlse = scale * rmax + jnp.log(
            jnp.sum(jnp.exp(scale * (sim - rmax)), axis=1, keepdims=True))
        rsum = scale * jnp.sum(sim, axis=1, keepdims=True)
        rce = rlse - (1.0 - eps) * scale * rmax - (eps / ng) * rsum
        # NOTE: if no row passes the threshold this is NaN, matching the
        # reference (CrossEntropyLoss over an empty selection).
        loss1 = jnp.sum(rce * rmask) / jnp.sum(rmask)

        # Column direction == CE on sim.T, done with axis-0 reductions (XLU)
        # on the same tile — no transpose, no second kernel.
        cmax = jnp.max(sim, axis=0, keepdims=True)          # (1, Ng)
        cmask = (cmax > thr).astype(jnp.float32)
        clse = scale * cmax + jnp.log(
            jnp.sum(jnp.exp(scale * (sim - cmax)), axis=0, keepdims=True))
        csum = scale * jnp.sum(sim, axis=0, keepdims=True)
        cce = clse - (1.0 - eps) * scale * cmax - (eps / m) * csum
        loss2 = jnp.sum(cce * cmask) / jnp.sum(cmask)

        loss_pseudo = 0.5 * (loss1 + loss2)
        l1_sum = jnp.sum(acc_ref[...])
        # Per-core contribution; only core 0 carries the (shared) pseudo loss.
        contrib = l1_scale * l1_sum + jnp.where(p == 0, loss_pseudo, 0.0)

        sub = lax.broadcasted_iota(jnp.int32, (8, 128), 0)
        lane = lax.broadcasted_iota(jnp.int32, (8, 128), 1)
        out_ref[...] = jnp.where((sub == 0) & (lane == 0), contrib, 0.0)


# ------------------------------- thin wrapper --------------------------------

def _lane_dense(x):
    """Flatten to a lane-dense (rows, 128) slab; zero-pad the tail if needed."""
    flat = x.reshape(-1)
    pad = (-flat.shape[0]) % 128
    if pad:
        flat = jnp.concatenate([flat, jnp.zeros((pad,), flat.dtype)])
    return flat.reshape(-1, 128)


def cycle_ae_loss(data, logit_scale_t, *, dro_num=2, idt_w=1.0,
                  label_smoothing=0.1, pseudo_thr=0.0,
                  tile_rows=256, n_cores=2):
    """Forward pass of CycleAELoss (mutual_match=False path), single kernel."""
    enc_a = data['enc_a']
    enc_b = data['enc_b']
    M, D = enc_a.shape
    N, Db = enc_b.shape
    assert D == Db and N % dro_num == 0
    Ng = N // dro_num

    # Fold the dro-group pooling into enc_b (pool in f32, keep MXU operand dtype).
    enc_bp = (enc_b.reshape(Ng, dro_num, D).astype(jnp.float32)
              .mean(axis=1).astype(enc_b.dtype))

    fake_AA, x_s = data['fake_AA'], data['x_s']
    fake_BB = data['fake_BB']
    x_t = data['x_t'].reshape(fake_BB.shape)      # explicit instead of .squeeze()
    assert fake_AA.shape == x_s.shape
    n_img = fake_AA.size                          # true per-image element count

    aa, xs = _lane_dense(fake_AA), _lane_dense(x_s)
    bb, xt = _lane_dense(fake_BB), _lane_dense(x_t)
    R = aa.shape[0]

    TR = min(tile_rows, R)                        # (TR,128) tiles, >=512 KiB at scale
    n_tiles = pl.cdiv(R, TR)
    P = max(1, min(n_cores, n_tiles))             # leading 'parallel' axis (v7x: 2 TCs)
    T_pc = pl.cdiv(n_tiles, P)

    kernel = functools.partial(
        _cycle_loss_kernel,
        tile_rows=TR, rows_total=R, tiles_total=n_tiles, tiles_per_core=T_pc,
        thr=float(pseudo_thr), eps=float(label_smoothing),
        l1_scale=float(idt_w) / float(n_img))

    enc_map = lambda p, t: (0, 0)
    img_map = lambda p, t: (jnp.minimum(p * T_pc + t, n_tiles - 1), 0)

    grid_spec = pltpu.PrefetchScalarGridSpec(
        num_scalar_prefetch=0,
        grid=(P, T_pc),
        in_specs=[
            pl.BlockSpec((M, D), enc_map),                        # enc_a
            pl.BlockSpec((Ng, D), enc_map),                       # pooled enc_b
            pl.BlockSpec(memory_space=pltpu.MemorySpace.SMEM),    # logit scale (log)
            pl.BlockSpec((TR, 128), img_map),                     # fake_AA
            pl.BlockSpec((TR, 128), img_map),                     # x_s
            pl.BlockSpec((TR, 128), img_map),                     # fake_BB
            pl.BlockSpec((TR, 128), img_map),                     # x_t
        ],
        out_specs=pl.BlockSpec((8, 128), lambda p, t: (p, 0)),
        scratch_shapes=[pltpu.VMEM((1, 128), jnp.float32)],
    )

    out = pl.pallas_call(
        kernel,
        out_shape=jax.ShapeDtypeStruct((P * 8, 128), jnp.float32),
        grid_spec=grid_spec,
        compiler_params=pltpu.CompilerParams(
            dimension_semantics=("parallel", "arbitrary"),
            vmem_limit_bytes=32 * 1024 * 1024),
    )(enc_a, enc_bp,
      jnp.reshape(logit_scale_t, (1,)).astype(jnp.float32),
      aa, xs, bb, xt)

    # TODO(synk): mutual_match branch (dynamic-shape boolean row gather) and the
    # recorder / real_acc bookkeeping are host-side side effects omitted here.

    # Tiny epilogue: only lane (8*p, 0) of each core block is non-zero.
    return jnp.sum(out)


# ------------------------------ pure-JAX reference ---------------------------

def _reference(data, logit_scale_t, dro_num, idt_w, eps, thr):
    enc_a = data['enc_a']; enc_b = data['enc_b']
    M = enc_a.shape[0]; N = enc_b.shape[0]; Ng = N // dro_num
    sim = enc_a @ enc_b.T
    sim_mean = sim.reshape(M, Ng, dro_num).mean(-1)
    scale = jnp.exp(logit_scale_t)

    def ce_side(mat):
        score = mat.max(-1)
        labels = mat.argmax(-1)
        keep = score > thr
        sel = mat[keep] * scale
        lab = labels[keep]
        logp = jax.nn.log_softmax(sel, axis=-1)
        nll = -logp[jnp.arange(sel.shape[0]), lab]
        smooth = -logp.mean(-1)
        return ((1.0 - eps) * nll + eps * smooth).mean()

    loss_pseudo = (ce_side(sim_mean) + ce_side(sim_mean.T)) * 0.5
    lA = idt_w * jnp.mean(jnp.abs(data['fake_AA'] - data['x_s']))
    lB = idt_w * jnp.mean(jnp.abs(
        data['fake_BB'] - data['x_t'].reshape(data['fake_BB'].shape)))
    return loss_pseudo + lA + lB


# ----------------------------------- main ------------------------------------

if __name__ == "__main__":
    key = jax.random.PRNGKey(0)
    ks = jax.random.split(key, 8)

    M, D = 8, 32          # enc_a: (M, D)
    dro_num = 2
    N = 16                # enc_b: (N, D), N // dro_num = 8 classes
    B, C, H, W = 2, 3, 16, 16

    enc_a = jax.random.normal(ks[0], (M, D), jnp.float32)
    enc_b = jax.random.normal(ks[1], (N, D), jnp.float32)
    enc_a = enc_a / jnp.linalg.norm(enc_a, axis=-1, keepdims=True)
    enc_b = enc_b / jnp.linalg.norm(enc_b, axis=-1, keepdims=True)

    data = {
        'enc_a': enc_a,
        'enc_b': enc_b,
        'fake_AA': jax.random.normal(ks[2], (B, C, H, W), jnp.float32),
        'x_s':     jax.random.normal(ks[3], (B, C, H, W), jnp.float32),
        'fake_BB': jax.random.normal(ks[4], (B, C, H, W), jnp.float32),
        'x_t':     jax.random.normal(ks[5], (B, C, H, W), jnp.float32),
        # y_s / y_t only feed the recorder's real_acc metric (omitted).
        'y_s': jnp.arange(M, dtype=jnp.int32),
        'y_t': jnp.arange(N, dtype=jnp.int32),
    }
    logit_scale_t = jnp.asarray(jnp.log(1.0 / 0.07), jnp.float32)  # CLIP-style init

    hp = dict(dro_num=dro_num, idt_w=1.0, label_smoothing=0.1, pseudo_thr=0.0)

    loss = cycle_ae_loss(data, logit_scale_t, **hp)
    loss = jax.block_until_ready(loss)

    ref = _reference(data, logit_scale_t, dro_num=hp['dro_num'],
                     idt_w=hp['idt_w'], eps=hp['label_smoothing'],
                     thr=hp['pseudo_thr'])

    assert jnp.isfinite(loss), f"non-finite loss: {loss}"
    assert abs(float(loss) - float(ref)) < 2e-3, (float(loss), float(ref))
    print("KERNEL_OK")
</pallas_src>

<mosaic_0001>
module attributes {stable_mosaic.version = 11 : i64} {
  func.func @_cycle_loss_kernel(%arg0: i32, %arg1: i32, %arg2: memref<8x32xf32, #tpu.memory_space<vmem>>, %arg3: memref<8x32xf32, #tpu.memory_space<vmem>>, %arg4: memref<1xf32, #tpu.memory_space<smem>>, %arg5: memref<12x128xf32, #tpu.memory_space<vmem>>, %arg6: memref<12x128xf32, #tpu.memory_space<vmem>>, %arg7: memref<12x128xf32, #tpu.memory_space<vmem>>, %arg8: memref<12x128xf32, #tpu.memory_space<vmem>>, %arg9: memref<8x128xf32, #tpu.memory_space<vmem>>, %arg10: memref<1x128xf32, #tpu.memory_space<vmem>>) attributes {dimension_semantics = [#tpu.dimension_semantics<parallel>, #tpu.dimension_semantics<arbitrary>], iteration_bounds = array<i64: 1, 1>, scalar_prefetch = 0 : i64, scratch_operands = 1 : i64, tpu.core_type = #tpu.core_type<tc>, window_params = [{pipeline_mode = #tpu.pipeline_mode<synchronous>, transform_indices = @transform_0, window_bounds = array<i64: 8, 32>}, {pipeline_mode = #tpu.pipeline_mode<synchronous>, transform_indices = @transform_1, window_bounds = array<i64: 8, 32>}, {transform_indices = @transform_2, window_bounds = array<i64: 1>}, {transform_indices = @transform_3, window_bounds = array<i64: 12, 128>}, {transform_indices = @transform_4, window_bounds = array<i64: 12, 128>}, {transform_indices = @transform_5, window_bounds = array<i64: 12, 128>}, {transform_indices = @transform_6, window_bounds = array<i64: 12, 128>}, {transform_indices = @transform_7, window_bounds = array<i64: 8, 128>}]} {
    %c0_i32 = arith.constant 0 : i32
    %0 = arith.cmpi eq, %arg1, %c0_i32 : i32
    %1 = arith.extui %0 : i1 to i32
    %c0_i32_0 = arith.constant 0 : i32
    %2 = arith.cmpi ne, %1, %c0_i32_0 : i32
    scf.if %2 {
      %cst_17 = arith.constant 0.000000e+00 : f32
      %33 = vector.broadcast %cst_17 : f32 to vector<1x128xf32>
      %c0_18 = arith.constant 0 : index
      %c0_19 = arith.constant 0 : index
      %34 = vector.load %arg10[%c0_18, %c0_19] : memref<1x128xf32, #tpu.memory_space<vmem>>, vector<1x128xf32>
      tpu.vector_store %arg10[%c0_18, %c0_19], %33 {strides = array<i32>} : memref<1x128xf32, #tpu.memory_space<vmem>>, vector<1x128xf32>,
    } else {
    }
    %c1_i32 = arith.constant 1 : i32
    %3 = arith.muli %arg0, %c1_i32 : i32
    %4 = arith.addi %3, %arg1 : i32
    %c12_i32 = arith.constant 12 : i32
    %5 = arith.muli %4, %c12_i32 : i32
    %6 = tpu.iota {dimensions = array<i32: 0>} : vector<12x128xi32>
    %7 = vector.broadcast %5 : i32 to vector<12x128xi32>
    %8 = arith.addi %7, %6 : vector<12x128xi32>
    %c12_i32_1 = arith.constant 12 : i32
    %9 = vector.broadcast %c12_i32_1 : i32 to vector<12x128xi32>
    %10 = arith.cmpi slt, %8, %9 : vector<12x128xi32>
    %c1_i32_2 = arith.constant 1 : i32
    %11 = arith.cmpi slt, %4, %c1_i32_2 : i32
    %12 = vector.broadcast %11 : i1 to vector<12x128xi1>
    %13 = arith.andi %10, %12 : vector<12x128xi1>
    %c0 = arith.constant 0 : index
    %c0_3 = arith.constant 0 : index
    %14 = vector.load %arg5[%c0, %c0_3] : memref<12x128xf32, #tpu.memory_space<vmem>>, vector<12x128xf32>
    %c0_4 = arith.constant 0 : index
    %c0_5 = arith.constant 0 : index
    %15 = vector.load %arg6[%c0_4, %c0_5] : memref<12x128xf32, #tpu.memory_space<vmem>>, vector<12x128xf32>
    %16 = arith.subf %14, %15 : vector<12x128xf32>
    %17 = math.absf %16 : vector<12x128xf32>
    %c0_6 = arith.constant 0 : index
    %c0_7 = arith.constant 0 : index
    %18 = vector.load %arg7[%c0_6, %c0_7] : memref<12x128xf32, #tpu.memory_space<vmem>>, vector<12x128xf32>
    %c0_8 = arith.constant 0 : index
    %c0_9 = arith.constant 0 : index
    %19 = vector.load %arg8[%c0_8, %c0_9] : memref<12x128xf32, #tpu.memory_space<vmem>>, vector<12x128xf32>
    %20 = arith.subf %18, %19 : vector<12x128xf32>
    %21 = math.absf %20 : vector<12x128xf32>
    %22 = arith.addf %17, %21 : vector<12x128xf32>
    %c0_10 = arith.constant 0 : index
    %c0_11 = arith.constant 0 : index
    %23 = vector.load %arg10[%c0_10, %c0_11] : memref<1x128xf32, #tpu.memory_space<vmem>>, vector<1x128xf32>
    %cst = arith.constant 0.000000e+00 : f32
    %24 = vector.broadcast %cst : f32 to vector<12x128xf32>
    %25 = arith.select %13, %22, %24 : vector<12x128xi1>, vector<12x128xf32>
    %cst_12 = arith.constant dense<0.000000e+00> : vector<128xf32>
    %26 = vector.multi_reduction <add>, %25, %cst_12 [0] : vector<12x128xf32> to vector<128xf32>
    %27 = vector.shape_cast %26 : vector<128xf32> to vector<1x128xf32>
    %28 = arith.addf %23, %27 : vector<1x128xf32>
    %c0_13 = arith.constant 0 : index
    %c0_14 = arith.constant 0 : index
    %29 = vector.load %arg10[%c0_13, %c0_14] : memref<1x128xf32, #tpu.memory_space<vmem>>, vector<1x128xf32>
    tpu.vector_store %arg10[%c0_13, %c0_14], %28 {strides = array<i32>} : memref<1x128xf32, #tpu.memory_space<vmem>>, vector<1x128xf32>,
    %c0_i32_15 = arith.constant 0 : i32
    %30 = arith.cmpi eq, %arg1, %c0_i32_15 : i32
    %31 = arith.extui %30 : i1 to i32
    %c0_i32_16 = arith.constant 0 : i32
    %32 = arith.cmpi ne, %31, %c0_i32_16 : i32
    scf.if %32 {
      %c0_17 = arith.constant 0 : index
      %33 = memref.load %arg4[%c0_17] : memref<1xf32, #tpu.memory_space<smem>>
      %34 = math.exp %33 : f32
      %c0_18 = arith.constant 0 : index
      %c0_19 = arith.constant 0 : index
      %35 = vector.load %arg2[%c0_18, %c0_19] : memref<8x32xf32, #tpu.memory_space<vmem>>, vector<8x32xf32>
      %c0_20 = arith.constant 0 : index
      %c0_21 = arith.constant 0 : index
      %36 = vector.load %arg3[%c0_20, %c0_21] : memref<8x32xf32, #tpu.memory_space<vmem>>, vector<8x32xf32>
      %cst_22 = arith.constant dense<0.000000e+00> : vector<8x8xf32>
      %37 = tpu.matmul %35, %36, %cst_22 {dimension_numbers = #tpu.dot_dimension_numbers<[1], [1], [0], [0], [0, 0, 1, 0], [], []>} : vector<8x32xf32>, vector<8x32xf32>, vector<8x8xf32> -> vector<8x8xf32>
      %cst_23 = arith.constant dense<0xFF800000> : vector<8xf32>
      %38 = vector.multi_reduction <maximumf>, %37, %cst_23 [1] : vector<8x8xf32> to vector<8xf32>
      %39 = vector.shape_cast %38 : vector<8xf32> to vector<8x1xf32>
      %cst_24 = arith.constant 0.000000e+00 : f32
      %40 = vector.broadcast %cst_24 : f32 to vector<8x1xf32>
      %41 = arith.cmpf ogt, %39, %40 : vector<8x1xf32>
      %42 = arith.extui %41 : vector<8x1xi1> to vector<8x1xi32>
      %43 = arith.sitofp %42 : vector<8x1xi32> to vector<8x1xf32>
      %44 = vector.broadcast %34 : f32 to vector<8x1xf32>
      %45 = arith.mulf %44, %39 : vector<8x1xf32>
      %46 = vector.broadcast %39 : vector<8x1xf32> to vector<8x8xf32>
      %47 = arith.subf %37, %46 : vector<8x8xf32>
      %48 = vector.broadcast %34 : f32 to vector<8x8xf32>
      %49 = arith.mulf %48, %47 : vector<8x8xf32>
      %50 = math.exp %49 : vector<8x8xf32>
      %cst_25 = arith.constant dense<0.000000e+00> : vector<8xf32>
      %51 = vector.multi_reduction <add>, %50, %cst_25 [1] : vector<8x8xf32> to vector<8xf32>
      %52 = vector.shape_cast %51 : vector<8xf32> to vector<8x1xf32>
      %53 = math.log %52 : vector<8x1xf32>
      %54 = arith.addf %45, %53 : vector<8x1xf32>
      %cst_26 = arith.constant dense<0.000000e+00> : vector<8xf32>
      %55 = vector.multi_reduction <add>, %37, %cst_26 [1] : vector<8x8xf32> to vector<8xf32>
      %56 = vector.shape_cast %55 : vector<8xf32> to vector<8x1xf32>
      %57 = vector.broadcast %34 : f32 to vector<8x1xf32>
      %58 = arith.mulf %57, %56 : vector<8x1xf32>
      %cst_27 = arith.constant 0.899999976 : f32
      %59 = arith.mulf %cst_27, %34 : f32
      %60 = vector.broadcast %59 : f32 to vector<8x1xf32>
      %61 = arith.mulf %60, %39 : vector<8x1xf32>
      %62 = arith.subf %54, %61 : vector<8x1xf32>
      %cst_28 = arith.constant 1.250000e-02 : f32
      %63 = vector.broadcast %cst_28 : f32 to vector<8x1xf32>
      %64 = arith.mulf %63, %58 : vector<8x1xf32>
      %65 = arith.subf %62, %64 : vector<8x1xf32>
      %66 = arith.mulf %65, %43 : vector<8x1xf32>
      %67 = vector.shape_cast %66 : vector<8x1xf32> to vector<1x8x1xf32>
      %cst_29 = arith.constant dense<0.000000e+00> : vector<1xf32>
      %68 = vector.multi_reduction <add>, %67, %cst_29 [1, 2] : vector<1x8x1xf32> to vector<1xf32>
      %69 = vector.shape_cast %68 : vector<1xf32> to vector<1x1x1xf32>
      %70 = vector.extract %69[0, 0, 0] : f32 from vector<1x1x1xf32>
      %71 = vector.shape_cast %43 : vector<8x1xf32> to vector<1x8x1xf32>
      %cst_30 = arith.constant dense<0.000000e+00> : vector<1xf32>
      %72 = vector.multi_reduction <add>, %71, %cst_30 [1, 2] : vector<1x8x1xf32> to vector<1xf32>
      %73 = vector.shape_cast %72 : vector<1xf32> to vector<1x1x1xf32>
      %74 = vector.extract %73[0, 0, 0] : f32 from vector<1x1x1xf32>
      %75 = arith.divf %70, %74 : f32
      %cst_31 = arith.constant dense<0xFF800000> : vector<8xf32>
      %76 = vector.multi_reduction <maximumf>, %37, %cst_31 [0] : vector<8x8xf32> to vector<8xf32>
      %77 = vector.shape_cast %76 : vector<8xf32> to vector<1x8xf32>
      %cst_32 = arith.constant 0.000000e+00 : f32
      %78 = vector.broadcast %cst_32 : f32 to vector<1x8xf32>
      %79 = arith.cmpf ogt, %77, %78 : vector<1x8xf32>
      %80 = arith.extui %79 : vector<1x8xi1> to vector<1x8xi32>
      %81 = arith.sitofp %80 : vector<1x8xi32> to vector<1x8xf32>
      %82 = vector.broadcast %34 : f32 to vector<1x8xf32>
      %83 = arith.mulf %82, %77 : vector<1x8xf32>
      %84 = vector.broadcast %77 : vector<1x8xf32> to vector<8x8xf32>
      %85 = arith.subf %37, %84 : vector<8x8xf32>
      %86 = vector.broadcast %34 : f32 to vector<8x8xf32>
      %87 = arith.mulf %86, %85 : vector<8x8xf32>
      %88 = math.exp %87 : vector<8x8xf32>
      %cst_33 = arith.constant dense<0.000000e+00> : vector<8xf32>
      %89 = vector.multi_reduction <add>, %88, %cst_33 [0] : vector<8x8xf32> to vector<8xf32>
      %90 = vector.shape_cast %89 : vector<8xf32> to vector<1x8xf32>
      %91 = math.log %90 : vector<1x8xf32>
      %92 = arith.addf %83, %91 : vector<1x8xf32>
      %cst_34 = arith.constant dense<0.000000e+00> : vector<8xf32>
      %93 = vector.multi_reduction <add>, %37, %cst_34 [0] : vector<8x8xf32> to vector<8xf32>
      %94 = vector.shape_cast %93 : vector<8xf32> to vector<1x8xf32>
      %95 = vector.broadcast %34 : f32 to vector<1x8xf32>
      %96 = arith.mulf %95, %94 : vector<1x8xf32>
      %cst_35 = arith.constant 0.899999976 : f32
      %97 = arith.mulf %cst_35, %34 : f32
      %98 = vector.broadcast %97 : f32 to vector<1x8xf32>
      %99 = arith.mulf %98, %77 : vector<1x8xf32>
      %100 = arith.subf %92, %99 : vector<1x8xf32>
      %cst_36 = arith.constant 1.250000e-02 : f32
      %101 = vector.broadcast %cst_36 : f32 to vector<1x8xf32>
      %102 = arith.mulf %101, %96 : vector<1x8xf32>
      %103 = arith.subf %100, %102 : vector<1x8xf32>
      %104 = arith.mulf %103, %81 : vector<1x8xf32>
      %105 = vector.shape_cast %104 : vector<1x8xf32> to vector<1x1x8xf32>
      %cst_37 = arith.constant dense<0.000000e+00> : vector<1xf32>
      %106 = vector.multi_reduction <add>, %105, %cst_37 [1, 2] : vector<1x1x8xf32> to vector<1xf32>
      %107 = vector.shape_cast %106 : vector<1xf32> to vector<1x1x1xf32>
      %108 = vector.extract %107[0, 0, 0] : f32 from vector<1x1x1xf32>
      %109 = vector.shape_cast %81 : vector<1x8xf32> to vector<1x1x8xf32>
      %cst_38 = arith.constant dense<0.000000e+00> : vector<1xf32>
      %110 = vector.multi_reduction <add>, %109, %cst_38 [1, 2] : vector<1x1x8xf32> to vector<1xf32>
      %111 = vector.shape_cast %110 : vector<1xf32> to vector<1x1x1xf32>
      %112 = vector.extract %111[0, 0, 0] : f32 from vector<1x1x1xf32>
      %113 = arith.divf %108, %112 : f32
      %114 = arith.addf %75, %113 : f32
      %cst_39 = arith.constant 5.000000e-01 : f32
      %115 = arith.mulf %cst_39, %114 : f32
      %c0_40 = arith.constant 0 : index
      %c0_41 = arith.constant 0 : index
      %116 = vector.load %arg10[%c0_40, %c0_41] : memref<1x128xf32, #tpu.memory_space<vmem>>, vector<1x128xf32>
      %117 = vector.shape_cast %116 : vector<1x128xf32> to vector<1x1x128xf32>
      %cst_42 = arith.constant dense<0.000000e+00> : vector<1xf32>
      %118 = vector.multi_reduction <add>, %117, %cst_42 [1, 2] : vector<1x1x128xf32> to vector<1xf32>
      %119 = vector.shape_cast %118 : vector<1xf32> to vector<1x1x1xf32>
      %120 = vector.extract %119[0, 0, 0] : f32 from vector<1x1x1xf32>
      %cst_43 = arith.constant 6.51041686E-4 : f32
      %121 = arith.mulf %cst_43, %120 : f32
      %c0_i32_44 = arith.constant 0 : i32
      %122 = arith.cmpi eq, %arg0, %c0_i32_44 : i32
      %cst_45 = arith.constant 0.000000e+00 : f32
      %123 = arith.select %122, %115, %cst_45 : f32
      %124 = arith.addf %121, %123 : f32
      %125 = tpu.iota {dimensions = array<i32: 0>} : vector<8x128xi32>
      %126 = tpu.iota {dimensions = array<i32: 1>} : vector<8x128xi32>
      %c0_i32_46 = arith.constant 0 : i32
      %127 = vector.broadcast %c0_i32_46 : i32 to vector<8x128xi32>
      %128 = arith.cmpi eq, %125, %127 : vector<8x128xi32>
      %c0_i32_47 = arith.constant 0 : i32
      %129 = vector.broadcast %c0_i32_47 : i32 to vector<8x128xi32>
      %130 = arith.cmpi eq, %126, %129 : vector<8x128xi32>
      %131 = arith.andi %128, %130 : vector<8x128xi1>
      %cst_48 = arith.constant 0.000000e+00 : f32
      %132 = vector.broadcast %124 : f32 to vector<8x128xf32>
      %133 = vector.broadcast %cst_48 : f32 to vector<8x128xf32>
      %134 = arith.select %131, %132, %133 : vector<8x128xi1>, vector<8x128xf32>
      %c0_49 = arith.constant 0 : index
      %c0_50 = arith.constant 0 : index
      %135 = vector.load %arg9[%c0_49, %c0_50] : memref<8x128xf32, #tpu.memory_space<vmem>>, vector<8x128xf32>
      tpu.vector_store %arg9[%c0_49, %c0_50], %134 {strides = array<i32>} : memref<8x128xf32, #tpu.memory_space<vmem>>, vector<8x128xf32>,
    } else {
    }
    return
  }
  func.func @transform_0(%arg0: i32, %arg1: i32) -> (i32, i32) {
    %c0_i32 = arith.constant 0 : i32
    %c0_i32_0 = arith.constant 0 : i32
    %c0_i32_1 = arith.constant 0 : i32
    return %c0_i32, %c0_i32_0 : i32, i32
  }
  func.func @transform_1(%arg0: i32, %arg1: i32) -> (i32, i32) {
    %c0_i32 = arith.constant 0 : i32
    %c0_i32_0 = arith.constant 0 : i32
    %c0_i32_1 = arith.constant 0 : i32
    return %c0_i32, %c0_i32_0 : i32, i32
  }
  func.func @transform_2(%arg0: i32, %arg1: i32) -> i32 {
    %c0_i32 = arith.constant 0 : i32
    %c0_i32_0 = arith.constant 0 : i32
    return %c0_i32 : i32
  }
  func.func @transform_3(%arg0: i32, %arg1: i32) -> (i32, i32) {
    %c1_i32 = arith.constant 1 : i32
    %0 = arith.muli %arg0, %c1_i32 : i32
    %1 = arith.addi %0, %arg1 : i32
    %c0_i32 = arith.constant 0 : i32
    %2 = arith.minsi %1, %c0_i32 : i32
    %c0_i32_0 = arith.constant 0 : i32
    %c0_i32_1 = arith.constant 0 : i32
    return %2, %c0_i32_0 : i32, i32
  }
  func.func @transform_4(%arg0: i32, %arg1: i32) -> (i32, i32) {
    %c1_i32 = arith.constant 1 : i32
    %0 = arith.muli %arg0, %c1_i32 : i32
    %1 = arith.addi %0, %arg1 : i32
    %c0_i32 = arith.constant 0 : i32
    %2 = arith.minsi %1, %c0_i32 : i32
    %c0_i32_0 = arith.constant 0 : i32
    %c0_i32_1 = arith.constant 0 : i32
    return %2, %c0_i32_0 : i32, i32
  }
  func.func @transform_5(%arg0: i32, %arg1: i32) -> (i32, i32) {
    %c1_i32 = arith.constant 1 : i32
    %0 = arith.muli %arg0, %c1_i32 : i32
    %1 = arith.addi %0, %arg1 : i32
    %c0_i32 = arith.constant 0 : i32
    %2 = arith.minsi %1, %c0_i32 : i32
    %c0_i32_0 = arith.constant 0 : i32
    %c0_i32_1 = arith.constant 0 : i32
    return %2, %c0_i32_0 : i32, i32
  }
  func.func @transform_6(%arg0: i32, %arg1: i32) -> (i32, i32) {
    %c1_i32 = arith.constant 1 : i32
    %0 = arith.muli %arg0, %c1_i32 : i32
    %1 = arith.addi %0, %arg1 : i32
    %c0_i32 = arith.constant 0 : i32
    %2 = arith.minsi %1, %c0_i32 : i32
    %c0_i32_0 = arith.constant 0 : i32
    %c0_i32_1 = arith.constant 0 : i32
    return %2, %c0_i32_0 : i32, i32
  }
  func.func @transform_7(%arg0: i32, %arg1: i32) -> (i32, i32) {
    %c0_i32 = arith.constant 0 : i32
    %c0_i32_0 = arith.constant 0 : i32
    return %arg0, %c0_i32 : i32, i32
  }
}

</mosaic_0001>

<llo_original>
// kernel: tpu_custom_call.1
$region0: #{tpu_custom_call.1}
  #allocation0 [shape = 'u32[]', space=smem, size = 0x4, offset = 0x4, fixed_abs, tag = 'smem constant byte address 0x4 - core index']
  #allocation1 [shape = 'u32[72,128]{1,0:T(1,128)}', space=vmem, size = 0x9000, scoped, tag = 'internal scratch']
  #allocation2 [shape = 'f32[1,128]{1,0:T(1,128)}', space=vmem, size = 0x200, scoped, tag = 'scratch operand']
  #allocation3 [shape = 'f32[1]{0:T(128)S(6)}', space=smem, size = 0x200, scoped, tag = 'scoped memory for tpu_custom_call.1']
  %s0 = inlined_call_operand.hbm [shape: f32[8,32], index: 0, kind: input, shape index: {}]
  %s1 = inlined_call_operand.hbm [shape: f32[8,32], index: 1, kind: input, shape index: {}]
  %s2 = inlined_call_operand.<no memory space> [shape: f32[1], index: 2, kind: input, shape index: {}]
  %s3 = inlined_call_operand.hbm [shape: f32[12,128], index: 3, kind: input, shape index: {}]
  %s4 = inlined_call_operand.hbm [shape: f32[12,128], index: 4, kind: input, shape index: {}]
  %s5 = inlined_call_operand.hbm [shape: f32[12,128], index: 5, kind: input, shape index: {}]
  %s6 = inlined_call_operand.hbm [shape: f32[12,128], index: 6, kind: input, shape index: {}]
  %s7 = inlined_call_operand.hbm [shape: f32[8,128], index: 7, kind: output, shape index: {}]
  %s8 = sld [smem:[#allocation0]]
  $region70: #{tpu_custom_call.1} parent=0
    _
  %s10 = ssub.s32 1, %s8
  %s11 = scalar_select 0, %s10, %s8
  %12 = sst [smem:[#allocation3]] %s2
  $region1: #{tpu_custom_call.1} parent=0
    #allocation4 [shape = 'u8[4096]{0}', space=vmem, size = 0x1000, scoped, tag = 'input window, operand 0, single buffered']
    #allocation5 [shape = 's32[1]{0}', space=sflag, size = 0x4, scoped, tag = 'scoped memory for tpu_custom_call.1']
    #allocation6 [shape = 's32[1]{0}', space=sflag, size = 0x4, scoped, tag = 'scoped memory for tpu_custom_call.1']
    #allocation7 [shape = 'u8[4096]{0}', space=vmem, size = 0x1000, scoped, tag = 'input window, operand 1, single buffered']
    #allocation8 [shape = 's32[1]{0}', space=sflag, size = 0x4, scoped, tag = 'scoped memory for tpu_custom_call.1']
    #allocation9 [shape = 'u8[8192]{0}', space=vmem, size = 0x2000, scoped, tag = 'input window, operand 3, single buffered']
    #allocation10 [shape = 'u8[8192]{0}', space=vmem, size = 0x2000, scoped, tag = 'input window, operand 4, single buffered']
    #allocation11 [shape = 's32[1]{0}', space=sflag, size = 0x4, scoped, tag = 'scoped memory for tpu_custom_call.1']
    #allocation12 [shape = 'u8[8192]{0}', space=vmem, size = 0x2000, scoped, tag = 'input window, operand 5, single buffered']
    #allocation13 [shape = 'u8[8192]{0}', space=vmem, size = 0x2000, scoped, tag = 'input window, operand 6, single buffered']
    #allocation14 [shape = 's32[1]{0}', space=sflag, size = 0x4, scoped, tag = 'scoped memory for tpu_custom_call.1']
    #allocation15 [shape = 'u8[4096]{0}', space=vmem, size = 0x1000, scoped, tag = 'output window, operand 0, single buffered']
    %13 = vsyncpa [#allocation5], 0
    %14 = vsyncpa [#allocation8], 0
    %15 = vsyncpa [#allocation11], 0
    %16 = vsyncpa [#allocation14], 0
    %17 = vsyncpa [#allocation6], 0
    // Predicated region
    $region2: #{tpu_custom_call.1} parent=1 // pred_check
      _
    $region3: #{tpu_custom_call.1} parent=1 // pred_check_branch
      %19 = sbr.rel (0) target = $region5
    $region4: #{tpu_custom_call.1} parent=1 // pred_region
      %21 = vsyncadd [#allocation5], 0
      %s23 = sshll.u32 %s0, 4
      %s24 = int_to_ptr.hbm [resolvable:$true] %s23
      %s25 = sshll.u32 [#allocation4], 4
      %s26 = int_to_ptr.vmem [resolvable:$true] %s25
      %28 = dma.hbm_to_vmem [thread:$0]  %s24, 128, %s26, [#allocation5]
    $region5: #{tpu_custom_call.1} parent=1 // pred_fallthru
      _
    // Predicated region
    $region6: #{tpu_custom_call.1} parent=1 // pred_check
      _
    $region7: #{tpu_custom_call.1} parent=1 // pred_check_branch
      %30 = sbr.rel (0) target = $region9
    $region8: #{tpu_custom_call.1} parent=1 // pred_region
      %32 = vsyncadd [#allocation8], 0
      %s34 = sshll.u32 %s1, 4
      %s35 = int_to_ptr.hbm [resolvable:$true] %s34
      %s36 = sshll.u32 [#allocation7], 4
      %s37 = int_to_ptr.vmem [resolvable:$true] %s36
      %39 = dma.hbm_to_vmem [thread:$0]  %s35, 128, %s37, [#allocation8]
    $region9: #{tpu_custom_call.1} parent=1 // pred_fallthru
      _
    // Predicated region
    $region10: #{tpu_custom_call.1} parent=1 // pred_check
      _
    $region11: #{tpu_custom_call.1} parent=1 // pred_check_branch
      %41 = sbr.rel (0) target = $region13
    $region12: #{tpu_custom_call.1} parent=1 // pred_region
      _
    $region13: #{tpu_custom_call.1} parent=1 // pred_fallthru
      _
    // Predicated region
    $region14: #{tpu_custom_call.1} parent=1 // pred_check
      _
    $region15: #{tpu_custom_call.1} parent=1 // pred_check_branch
      %43 = sbr.rel (0) target = $region17
    $region16: #{tpu_custom_call.1} parent=1 // pred_region
      %s44 = sadd.s32 0, 0
      %p45 = scmp.lt.s32.totalorder %s44, 0
      %s46 = scalar_select %p45, %s44, 0
      %s47 = smul.u32 2, %s46
      %49 = vsyncadd [#allocation8], 0
      %s50 = smul.addr %s47, 8
      %s51 = scalar_lea.hbm %s3, %s50
      %s52 = sshll.u32 %s51, 4
      %s53 = int_to_ptr.hbm [resolvable:$true] %s52
      %s54 = sshll.u32 [#allocation9], 4
      %s55 = int_to_ptr.vmem [resolvable:$true] %s54
      %60 = dma.hbm_to_vmem [thread:$0]  %s53, 256, %s55, [#allocation8], 128, 128, 8
    $region17: #{tpu_custom_call.1} parent=1 // pred_fallthru
      _
    // Predicated region
    $region18: #{tpu_custom_call.1} parent=1 // pred_check
      _
    $region19: #{tpu_custom_call.1} parent=1 // pred_check_branch
      %62 = sbr.rel (0) target = $region21
    $region20: #{tpu_custom_call.1} parent=1 // pred_region
      %s63 = sadd.s32 0, 0
      %p64 = scmp.lt.s32.totalorder %s63, 0
      %s65 = scalar_select %p64, %s63, 0
      %s66 = smul.u32 2, %s65
      %68 = vsyncadd [#allocation11], 0
      %s69 = smul.addr %s66, 8
      %s70 = scalar_lea.hbm %s4, %s69
      %s71 = sshll.u32 %s70, 4
      %s72 = int_to_ptr.hbm [resolvable:$true] %s71
      %s73 = sshll.u32 [#allocation10], 4
      %s74 = int_to_ptr.vmem [resolvable:$true] %s73
      %79 = dma.hbm_to_vmem [thread:$0]  %s72, 256, %s74, [#allocation11], 128, 128, 8
    $region21: #{tpu_custom_call.1} parent=1 // pred_fallthru
      _
    // Predicated region
    $region22: #{tpu_custom_call.1} parent=1 // pred_check
      _
    $region23: #{tpu_custom_call.1} parent=1 // pred_check_branch
      %81 = sbr.rel (0) target = $region25
    $region24: #{tpu_custom_call.1} parent=1 // pred_region
      %s82 = sadd.s32 0, 0
      %p83 = scmp.lt.s32.totalorder %s82, 0
      %s84 = scalar_select %p83, %s82, 0
      %s85 = smul.u32 2, %s84
      %87 = vsyncadd [#allocation11], 0
      %s88 = smul.addr %s85, 8
      %s89 = scalar_lea.hbm %s5, %s88
      %s90 = sshll.u32 %s89, 4
      %s91 = int_to_ptr.hbm [resolvable:$true] %s90
      %s92 = sshll.u32 [#allocation12], 4
      %s93 = int_to_ptr.vmem [resolvable:$true] %s92
      %98 = dma.hbm_to_vmem [thread:$0]  %s91, 256, %s93, [#allocation11], 128, 128, 8
    $region25: #{tpu_custom_call.1} parent=1 // pred_fallthru
      _
    // Predicated region
    $region26: #{tpu_custom_call.1} parent=1 // pred_check
      _
    $region27: #{tpu_custom_call.1} parent=1 // pred_check_branch
      %100 = sbr.rel (0) target = $region29
    $region28: #{tpu_custom_call.1} parent=1 // pred_region
      %s101 = sadd.s32 0, 0
      %p102 = scmp.lt.s32.totalorder %s101, 0
      %s103 = scalar_select %p102, %s101, 0
      %s104 = smul.u32 2, %s103
      %106 = vsyncadd [#allocation14], 0
      %s107 = smul.addr %s104, 8
      %s108 = scalar_lea.hbm %s6, %s107
      %s109 = sshll.u32 %s108, 4
      %s110 = int_to_ptr.hbm [resolvable:$true] %s109
      %s111 = sshll.u32 [#allocation13], 4
      %s112 = int_to_ptr.vmem [resolvable:$true] %s111
      %117 = dma.hbm_to_vmem [thread:$0]  %s110, 256, %s112, [#allocation14], 128, 128, 8
    $region29: #{tpu_custom_call.1} parent=1 // pred_fallthru
      _
    // Predicated region
    $region30: #{tpu_custom_call.1} parent=1 // pred_check
      _
    $region31: #{tpu_custom_call.1} parent=1 // pred_check_branch
      %119 = sbr.rel (0) target = $region33
    $region32: #{tpu_custom_call.1} parent=1 // pred_region
      %121 = dma.done [#allocation5], 128
    $region33: #{tpu_custom_call.1} parent=1 // pred_fallthru
      _
    // Predicated region
    $region34: #{tpu_custom_call.1} parent=1 // pred_check
      _
    $region35: #{tpu_custom_call.1} parent=1 // pred_check_branch
      %123 = sbr.rel (0) target = $region37
    $region36: #{tpu_custom_call.1} parent=1 // pred_region
      %125 = dma.done [#allocation8], 128
    $region37: #{tpu_custom_call.1} parent=1 // pred_fallthru
      _
    // Predicated region
    $region38: #{tpu_custom_call.1} parent=1 // pred_check
      _
    $region39: #{tpu_custom_call.1} parent=1 // pred_check_branch
      %127 = sbr.rel (0) target = $region41
    $region40: #{tpu_custom_call.1} parent=1 // pred_region
      %129 = dma.done [#allocation8], 256
    $region41: #{tpu_custom_call.1} parent=1 // pred_fallthru
      _
    // Predicated region
    $region42: #{tpu_custom_call.1} parent=1 // pred_check
      _
    $region43: #{tpu_custom_call.1} parent=1 // pred_check_branch
      %131 = sbr.rel (0) target = $region45
    $region44: #{tpu_custom_call.1} parent=1 // pred_region
      %133 = dma.done [#allocation11], 256
    $region45: #{tpu_custom_call.1} parent=1 // pred_fallthru
      _
    // Predicated region
    $region46: #{tpu_custom_call.1} parent=1 // pred_check
      _
    $region47: #{tpu_custom_call.1} parent=1 // pred_check_branch
      %135 = sbr.rel (0) target = $region49
    $region48: #{tpu_custom_call.1} parent=1 // pred_region
      %137 = dma.done [#allocation11], 256
    $region49: #{tpu_custom_call.1} parent=1 // pred_fallthru
      _
    // Predicated region
    $region50: #{tpu_custom_call.1} parent=1 // pred_check
      _
    $region51: #{tpu_custom_call.1} parent=1 // pred_check_branch
      %139 = sbr.rel (0) target = $region53
    $region52: #{tpu_custom_call.1} parent=1 // pred_region
      %141 = dma.done [#allocation14], 256
    $region53: #{tpu_custom_call.1} parent=1 // pred_fallthru
      _
    %s142 = sadd.s32 0, 0
    %p143 = scmp.lt.s32.totalorder %s142, 0
    %s144 = scalar_select %p143, %s142, 0
    %s145 = smul.u32 2, %s144
    %s146 = sadd.s32 0, 0
    %p147 = scmp.lt.s32.totalorder %s146, 0
    %s148 = scalar_select %p147, %s146, 0
    %s149 = smul.u32 2, %s148
    %s150 = sadd.s32 0, 0
    %p151 = scmp.lt.s32.totalorder %s150, 0
    %s152 = scalar_select %p151, %s150, 0
    %s153 = smul.u32 2, %s152
    %s154 = sadd.s32 0, 0
    %p155 = scmp.lt.s32.totalorder %s154, 0
    %s156 = scalar_select %p155, %s154, 0
    %s157 = smul.u32 2, %s156
    %p158 = scmp.eq.s32.totalorder 0, 0
    // Predicated region
    $region54: #{tpu_custom_call.1} parent=1 // pred_check
      %p159 = pneg %p158
    $region55: #{tpu_custom_call.1} parent=1 // pred_check_branch
      %161 = sbr.rel (%p159) target = $region57
    $region56: #{tpu_custom_call.1} parent=1 // pred_region
      %162 = vst [vmem:[#allocation2] sm:$0x1] 0.0
    $region57: #{tpu_custom_call.1} parent=1 // pred_fallthru
      _
    %s163 = sadd.s32 0, 0
    %s164 = smul.u32 %s163, 12
    %v165 = vlaneseq
    %v166 = vshrl.u32 %v165, 7
    %v167 = vadd.s32 %v166, 8
    %v168 = vstv %s164
    %v169 = vadd.s32 %v168, %v166
    %v170 = vadd.s32 %v168, %v167
    %vm171 = vcmp.lt.s32.totalorder %v169, 12
    %vm172 = vcmp.lt.s32.totalorder %v170, 12
    %p173 = scmp.lt.s32.totalorder %s163, 1
    %s174 = scalar_select %p173, 1, 0
    %v175 = vstv %s174
    %vm176 = vcmp.eq.s32.totalorder %v175, 1
    %vm177 = vmand %vm171, %vm176
    %vm178 = vmand %vm172, %vm176
    %v179 = vld [vmem:[#allocation9] sm:$0xff]
    %v180 = vld [vmem:[#allocation9 + $0x8] sm:$0xf]
    %v181 = vld [vmem:[#allocation10] sm:$0xff]
    %v182 = vld [vmem:[#allocation10 + $0x8] sm:$0xf]
    %v183 = vsub.f32 %v179, %v181
    %v184 = vsub.f32 %v180, %v182
    %v185 = vand.u32 2147483647, %v183
    %v186 = vand.u32 2147483647, %v184
    %v187 = vld [vmem:[#allocation12] sm:$0xff]
    %v188 = vld [vmem:[#allocation12 + $0x8] sm:$0xf]
    %v189 = vld [vmem:[#allocation13] sm:$0xff]
    %v190 = vld [vmem:[#allocation13 + $0x8] sm:$0xf]
    %v191 = vsub.f32 %v187, %v189
    %v192 = vsub.f32 %v188, %v190
    %v193 = vand.u32 2147483647, %v191
    %v194 = vand.u32 2147483647, %v192
    %v195 = vadd.f32 %v185, %v193
    %v196 = vadd.f32 %v186, %v194
    %v197 = vld [vmem:[#allocation2] sm:$0x1]
    %v198 = vsel %vm177, %v195, 0.0
    %v199 = vsel %vm178, %v196, 0.0
    %vm200 = vcmask 1043456
    %v201 = vsel %vm200, %v199, 0.0
    %v202 = vadd.f32 %v198, %v201
    %v203 = vrot.slane %v202, 4
    %v204 = vadd.f32 %v202, %v203
    %v205 = vrot.slane %v204, 2
    %v206 = vadd.f32 %v204, %v205
    %v207 = vrot.slane %v206, 1
    %v208 = vadd.f32 %v206, %v207
    %v209 = vadd.f32 %v197, %v208
    %210 = vst [vmem:[#allocation2] sm:$0x1] %v209
    // Predicated region
    $region58: #{tpu_custom_call.1} parent=1 // pred_check
      %p211 = pneg %p158
    $region59: #{tpu_custom_call.1} parent=1 // pred_check_branch
      %213 = sbr.rel (%p211) target = $region61
    $region60: #{tpu_custom_call.1} parent=1 // pred_region
      %s214 = sld [smem:[#allocation3]]
      %v215 = vstv %s214
      %v216 = vmul.f32 %v215, 1.442695
      %v217 = vpow.pop %v216
      %s218 = vtos %v217
      %v219 = vld [vmem:[#allocation4] sm:$0xff]
      %v220 = vld [vmem:[#allocation7] sm:$0xff]
      %vm221 = vcmask 261120
      %v223 = vsel %vm221, %v219, 0
      %v226 = vsel %vm221, %v220, 0
      %228 = vmatpush.xpose.msra.mxu0 0.0
      %229 = vmatpush.xpose.msra.mxu0 0.0
      %230 = vmatpush.xpose.msra.mxu0 0.0
      %231 = vmatpush.xpose.msra.mxu0 0.0
      %232 = vmatpush.xpose.msra.mxu0 0.0
      %233 = vmatpush.xpose.msra.mxu0 0.0
      %234 = vmatpush.xpose.msra.mxu0 0.0
      %235 = vmatpush.xpose.msra.mxu0 0.0
      %236 = vmatpush.xpose.msra.mxu0 0.0
      %237 = vmatpush.xpose.msra.mxu0 0.0
      %238 = vmatpush.xpose.msra.mxu0 0.0
      %239 = vmatpush.xpose.msra.mxu0 0.0
      %240 = vmatpush.xpose.msra.mxu0 0.0
      %241 = vmatpush.xpose.msra.mxu0 0.0
      %242 = vmatpush.xpose.msra.mxu0 0.0
      %243 = vmatpush.xpose.msra.mxu0 %v226
      %244 = vmatmul.f32.gmra.mxu0 %v223
      %v245 = vpop.f32.mrf.mxu0
      %v246 = vadd.f32 0.0, %v245
      %247 = vdwg.mxu0
      %vm248 = vcmask 64512
      %v249 = vsel %vm248, %v246, -inf
      %250 = vmax.xlane.f32.xlu0 %v249
      %v251 = vpop.xlane.xlu0 %250
      %vm252 = vcmp.gt.f32.partialorder %v251, 0.0
      %v253 = vsel %vm252, 1, 0
      %v254 = vcvt.s32.f32 %v253
      %v255 = vstv %s218
      %v256 = vmul.f32 %v255, %v251
      %v257 = vsub.f32 %v246, %v251
      %v258 = vmul.f32 %v255, %v257
      %v259 = vmul.f32 %v258, 1.442695
      %v260 = vpow.pop %v259
      %v261 = vsel %vm248, %v260, 0.0
      %262 = vadd.xlane.f32.xlu0 %v261
      %v263 = vpop.xlane.xlu0 %262
      %v264 = vlog2.pop %v263
      %v265 = vmul.f32 %v264, 0.6931472
      %v266 = vadd.f32 %v256, %v265
      %v267 = vsel %vm248, %v246, 0.0
      %268 = vadd.xlane.f32.xlu0 %v267
      %v269 = vpop.xlane.xlu0 %268
      %v270 = vmul.f32 %v255, %v269
      %s271 = smul.f32 %s218, 0.9
      %v272 = vstv %s271
      %v273 = vmul.f32 %v272, %v251
      %v274 = vsub.f32 %v266, %v273
      %v275 = vmul.f32 %v270, 0.0125
      %v276 = vsub.f32 %v274, %v275
      %v277 = vmul.f32 %v276, %v254
      %vm278 = vcmask 7168
      %v279 = vsel %vm278, %v277, 0.0
      %280 = vadd.xlane.f32.xlu0 %v279
      %v281 = vpop.xlane.xlu0 %280
      %v282 = vrot.slane %v281, 4
      %v283 = vadd.f32 %v281, %v282
      %v284 = vrot.slane %v283, 2
      %v285 = vadd.f32 %v283, %v284
      %v286 = vrot.slane %v285, 1
      %v287 = vadd.f32 %v285, %v286
      %s288 = vtos %v287
      %v289 = vsel %vm278, %v254, 0.0
      %290 = vadd.xlane.f32.xlu0 %v289
      %v291 = vpop.xlane.xlu0 %290
      %v292 = vrot.slane %v291, 4
      %v293 = vadd.f32 %v291, %v292
      %v294 = vrot.slane %v293, 2
      %v295 = vadd.f32 %v293, %v294
      %v296 = vrot.slane %v295, 1
      %v297 = vadd.f32 %v295, %v296
      %s298 = vtos %v297
      %v299 = vstv %s298
      %v300 = vrcp.pop %v299
      %v301 = vmul.f32 %v299, %v300
      %v302 = vsub.f32 1.0, %v301
      %v303 = vmul.f32 %v300, %v302
      %v304 = vadd.f32 %v300, %v303
      %vm305 = vweird.f32 %v299
      %vm306 = vweird.f32 %v300
      %vm307 = vmor %vm305, %vm306
      %v308 = vsel %vm307, %v300, %v304
      %v309 = vand.u32 2147483647, %v299
      %vm310 = vcmp.eq.f32.partialorder %v309, 8.507059e+37
      %v311 = vand.u32 %v299, 2147483648
      %v312 = vor.u32 1.1754944e-38, %v311
      %v313 = vsel %vm310, %v312, %v308
      %s314 = vtos %v313
      %s315 = smul.f32 %s288, %s314
      %v316 = vrot.slane %v249, 4
      %v317 = vmax.f32 %v249, %v316
      %v318 = vrot.slane %v317, 2
      %v319 = vmax.f32 %v317, %v318
      %v320 = vrot.slane %v319, 1
      %v321 = vmax.f32 %v319, %v320
      %vm322 = vcmp.gt.f32.partialorder %v321, 0.0
      %v323 = vsel %vm322, 1, 0
      %v324 = vcvt.s32.f32 %v323
      %v325 = vmul.f32 %v255, %v321
      %v326 = vsub.f32 %v246, %v321
      %v327 = vmul.f32 %v255, %v326
      %v328 = vmul.f32 %v327, 1.442695
      %v329 = vpow.pop %v328
      %v330 = vsel %vm248, %v329, 0.0
      %v331 = vrot.slane %v330, 4
      %v332 = vadd.f32 %v330, %v331
      %v333 = vrot.slane %v332, 2
      %v334 = vadd.f32 %v332, %v333
      %v335 = vrot.slane %v334, 1
      %v336 = vadd.f32 %v334, %v335
      %v337 = vlog2.pop %v336
      %v338 = vmul.f32 %v337, 0.6931472
      %v339 = vadd.f32 %v325, %v338
      %v340 = vrot.slane %v267, 4
      %v341 = vadd.f32 %v267, %v340
      %v342 = vrot.slane %v341, 2
      %v343 = vadd.f32 %v341, %v342
      %v344 = vrot.slane %v343, 1
      %v345 = vadd.f32 %v343, %v344
      %v346 = vmul.f32 %v255, %v345
      %v347 = vmul.f32 %v272, %v321
      %v348 = vsub.f32 %v339, %v347
      %v349 = vmul.f32 %v346, 0.0125
      %v350 = vsub.f32 %v348, %v349
      %v351 = vmul.f32 %v350, %v324
      %vm352 = vcmask 57344
      %v353 = vsel %vm352, %v351, 0.0
      %354 = vadd.xlane.f32.xlu0 %v353
      %v355 = vpop.xlane.xlu0 %354
      %v356 = vrot.slane %v355, 4
      %v357 = vadd.f32 %v355, %v356
      %v358 = vrot.slane %v357, 2
      %v359 = vadd.f32 %v357, %v358
      %v360 = vrot.slane %v359, 1
      %v361 = vadd.f32 %v359, %v360
      %s362 = vtos %v361
      %v363 = vsel %vm352, %v324, 0.0
      %364 = vadd.xlane.f32.xlu0 %v363
      %v365 = vpop.xlane.xlu0 %364
      %v366 = vrot.slane %v365, 4
      %v367 = vadd.f32 %v365, %v366
      %v368 = vrot.slane %v367, 2
      %v369 = vadd.f32 %v367, %v368
      %v370 = vrot.slane %v369, 1
      %v371 = vadd.f32 %v369, %v370
      %s372 = vtos %v371
      %v373 = vstv %s372
      %v374 = vrcp.pop %v373
      %v375 = vmul.f32 %v373, %v374
      %v376 = vsub.f32 1.0, %v375
      %v377 = vmul.f32 %v374, %v376
      %v378 = vadd.f32 %v374, %v377
      %vm379 = vweird.f32 %v373
      %vm380 = vweird.f32 %v374
      %vm381 = vmor %vm379, %vm380
      %v382 = vsel %vm381, %v374, %v378
      %v383 = vand.u32 2147483647, %v373
      %vm384 = vcmp.eq.f32.partialorder %v383, 8.507059e+37
      %v385 = vand.u32 %v373, 2147483648
      %v386 = vor.u32 1.1754944e-38, %v385
      %v387 = vsel %vm384, %v386, %v382
      %s388 = vtos %v387
      %s389 = smul.f32 %s362, %s388
      %s390 = sadd.f32 %s315, %s389
      %s391 = smul.f32 %s390, 0.5
      %v392 = vld [vmem:[#allocation2] sm:$0x1]
      %vm393 = vcmask 1040384
      %v394 = vsel %vm393, %v392, 0.0
      %395 = vadd.xlane.f32.xlu0 %v394
      %v396 = vpop.xlane.xlu0 %395
      %v397 = vrot.slane %v396, 4
      %v398 = vadd.f32 %v396, %v397
      %v399 = vrot.slane %v398, 2
      %v400 = vadd.f32 %v398, %v399
      %v401 = vrot.slane %v400, 1
      %v402 = vadd.f32 %v400, %v401
      %s403 = vtos %v402
      %s404 = smul.f32 %s403, 0.0006510417
      %p405 = scmp.eq.s32.totalorder 0, 0
      %s406 = scalar_select %p405, %s391, 0.0
      %s407 = sadd.f32 %s404, %s406
      %v408 = vlaneseq
      %v409 = vand.u32 %v408, 127
      %vm410 = vcmp.eq.s32.totalorder %v166, 0
      %vm411 = vcmp.eq.s32.totalorder %v409, 0
      %vm412 = vmand %vm410, %vm411
      %v413 = vstv %s407
      %v414 = vsel %vm412, %v413, 0.0
      %415 = vst [vmem:[#allocation15] sm:$0xff] %v414
    $region61: #{tpu_custom_call.1} parent=1 // pred_fallthru
      _
    // Predicated region
    $region62: #{tpu_custom_call.1} parent=1 // pred_check
      _
    $region63: #{tpu_custom_call.1} parent=1 // pred_check_branch
      %417 = sbr.rel (0) target = $region65
    $region64: #{tpu_custom_call.1} parent=1 // pred_region
      %419 = vsyncadd [#allocation6], 0
      %s421 = sshll.u32 [#allocation15], 4
      %s422 = int_to_ptr.vmem [resolvable:$true] %s421
      %s423 = sshll.u32 %s7, 4
      %s424 = int_to_ptr.hbm [resolvable:$true] %s423
      %426 = dma.vmem_to_hbm [thread:$0]  %s422, 128, %s424, [#allocation6]
    $region65: #{tpu_custom_call.1} parent=1 // pred_fallthru
      _
    // Predicated region
    $region66: #{tpu_custom_call.1} parent=1 // pred_check
      _
    $region67: #{tpu_custom_call.1} parent=1 // pred_check_branch
      %428 = sbr.rel (0) target = $region69
    $region68: #{tpu_custom_call.1} parent=1 // pred_region
      %430 = dma.done [#allocation6], 128
    $region69: #{tpu_custom_call.1} parent=1 // pred_fallthru
      _
    %431 = vsyncpa [#allocation5], 1
    %432 = vsyncpa [#allocation8], 1
    %433 = vsyncpa [#allocation11], 1
    %434 = vsyncpa [#allocation14], 1
    %435 = vsyncpa [#allocation6], 1

</llo_original>
